<compile_context>
chip_gen: v5e
topology: v5e:2x2
jax: 0.10.0
libtpu: 0.0.40
codegen_flags: <defaults>
</compile_context>

<pallas_src>
import jax
import jax.numpy as jnp
from jax.experimental import pallas as pl
from jax.experimental.pallas import tpu as pltpu


_MAX_INLINE = 32   # max #embeds (plus optional carry) passed as separate double-buffered inputs


def _chip_params():
    """Per-generation (tile budget bytes, lane-tile cap, explicit scoped-VMEM limit)."""
    budget, th_cap, vmem_limit = 12 << 20, 1024, 28 << 20      # safe default (v6e-class)
    try:
        kind = jax.devices()[0].device_kind.lower()
    except Exception:
        kind = ""
    if ("v5 lite" in kind) or ("v5e" in kind) or ("v5litepod" in kind):
        budget, th_cap, vmem_limit = 9 << 20, 1024, 14 << 20   # v5e: modest tiles, headroom
    elif ("v7" in kind) or ("7x" in kind):
        budget, th_cap, vmem_limit = 20 << 20, 2048, 32 << 20  # v7x: bigger tiles, 64 MiB/TC
    return budget, th_cap, vmem_limit


def _pick_tile(dim, align, cap):
    """Largest tile t <= cap with t % align == 0 and dim % t == 0; else the full dim."""
    if dim % align != 0:
        return dim                       # full-extent block is always legal
    t = min(dim, max(align, cap - cap % align))
    while t > align and dim % t != 0:
        t -= align
    return t if dim % t == 0 else dim


def _pick_tiles(b, h, bytes_per_elem, budget, th_cap):
    th = _pick_tile(h, 128, th_cap)      # lane dim: multiple of 128 -> unmasked stores
    cap_rows = max(8, (budget // (bytes_per_elem * th)) // 8 * 8)
    tb = _pick_tile(b, 8, cap_rows)
    # Guarantee >= 2 grid steps along the parallel B axis when the whole problem would
    # otherwise be a single tile (lets v7x's 2 TensorCores both get work).
    if (b // tb) * (h // th) < 2:
        tb_half = _pick_tile(b, 8, max(8, (b // 2) // 8 * 8))
        if b % tb_half == 0 and b // tb_half >= 2:
            tb = tb_half
    return tb, th


def _make_sum_kernel(n_inputs, acc_dtype):
    """Sum n_inputs (tb, th) tiles, accumulating in acc_dtype, store as o_ref.dtype."""
    def kernel(*refs):
        x_refs, o_ref = refs[:n_inputs], refs[n_inputs]
        acc = x_refs[0][...].astype(acc_dtype)
        for r in x_refs[1:]:
            acc = acc + r[...].astype(acc_dtype)
        o_ref[...] = acc.astype(o_ref.dtype)
    return kernel


def _sum_group(inputs, result_dtype, acc_dtype, budget, th_cap, vmem_limit):
    """One single-pass multi-input sum over `inputs` (list of (B, H) arrays)."""
    n_in = len(inputs)
    b, h = inputs[0].shape

    # VMEM accounting: double-buffered inputs + double-buffered output + wide accumulator.
    in_bytes = sum(jnp.dtype(x.dtype).itemsize for x in inputs)
    bytes_per_elem = (2 * in_bytes
                      + 2 * jnp.dtype(result_dtype).itemsize
                      + jnp.dtype(acc_dtype).itemsize)
    tb, th = _pick_tiles(b, h, bytes_per_elem, budget, th_cap)

    return pl.pallas_call(
        _make_sum_kernel(n_in, acc_dtype),
        out_shape=jax.ShapeDtypeStruct((b, h), result_dtype),
        grid_spec=pltpu.PrefetchScalarGridSpec(
            num_scalar_prefetch=0,
            grid=(b // tb, h // th),
            in_specs=[pl.BlockSpec((tb, th), lambda i, j: (i, j)) for _ in range(n_in)],
            out_specs=pl.BlockSpec((tb, th), lambda i, j: (i, j)),
        ),
        compiler_params=pltpu.CompilerParams(
            dimension_semantics=("parallel", "parallel"),
            vmem_limit_bytes=vmem_limit,
        ),
    )(*inputs)


def ireduction_forward(embeds):
    """Sum-reduce a list of (B, H) embedding tensors -> (B, H)."""
    n = len(embeds)
    b, h = embeds[0].shape
    out_dtype = jnp.result_type(*[e.dtype for e in embeds])
    if n == 1:
        return embeds[0].astype(out_dtype)

    acc_dtype = jnp.float32 if jnp.issubdtype(out_dtype, jnp.inexact) else jnp.int32
    budget, th_cap, vmem_limit = _chip_params()

    # Keep the output lane-dense: pad H up to a multiple of 128 and slice at the end.
    h_pad = -(-h // 128) * 128
    if h_pad != h:
        embeds = [jnp.pad(e, ((0, 0), (0, h_pad - h))) for e in embeds]

    # Group-chained single-pass reduction: each group of <= _MAX_INLINE embeds (plus the
    # running partial, kept in acc_dtype) is summed by one multi-input kernel call.
    carry = None
    idx = 0
    while idx < n:
        take = min(_MAX_INLINE - (1 if carry is not None else 0), n - idx)
        group = list(embeds[idx: idx + take])
        idx += take
        is_last = idx >= n
        inputs = ([carry] if carry is not None else []) + group
        carry = _sum_group(inputs,
                           result_dtype=out_dtype if is_last else acc_dtype,
                           acc_dtype=acc_dtype,
                           budget=budget, th_cap=th_cap, vmem_limit=vmem_limit)

    out = carry
    if h_pad != h:
        out = out[:, :h]
    return out


class IReductionPallas:
    name = "reduction interface"

    def __init__(self, n_embeds: int, h_emb: int):
        self.n_embeds = n_embeds
        self.h_emb = h_emb

    @property
    def embedding_size(self) -> int:
        return self.h_emb

    def __call__(self, embeds):
        assert len(embeds) == self.n_embeds, "wrong number of embeddings"
        b = embeds[0].shape[0]
        assert all(e.ndim == 2 and e.shape == (b, self.h_emb) for e in embeds), \
            "all embeddings must be (batch, h_emb) with a consistent batch"
        return ireduction_forward(embeds)


if __name__ == "__main__":
    root = jax.random.PRNGKey(0)

    def make_embeds(case, n, b, h, dtype):
        keys = jax.random.split(jax.random.fold_in(root, case), n)
        return [jax.random.normal(k, (b, h), dtype=jnp.float32).astype(dtype) for k in keys]

    # Case 1: tiny f32 (single-vreg tiles), multi-input single-pass path.
    n, b, h = 4, 8, 128
    embeds = make_embeds(1, n, b, h, jnp.float32)
    out = jax.block_until_ready(IReductionPallas(n, h)(embeds))
    ref = jnp.sum(jnp.stack(embeds, axis=0), axis=0)
    assert out.shape == (b, h) and out.dtype == jnp.float32
    assert jnp.allclose(out, ref, atol=1e-5, rtol=1e-5)

    # Case 2: bf16 embeds -> f32 accumulation, cast only on the final store.
    n, b, h = 6, 32, 256
    embeds = make_embeds(2, n, b, h, jnp.bfloat16)
    out = jax.block_until_ready(IReductionPallas(n, h)(embeds))
    ref = jnp.sum(jnp.stack(embeds, axis=0).astype(jnp.float32), axis=0).astype(jnp.bfloat16)
    assert out.shape == (b, h) and out.dtype == jnp.bfloat16
    assert jnp.allclose(out.astype(jnp.float32), ref.astype(jnp.float32), atol=1e-2, rtol=1e-2)

    # Case 3: n > _MAX_INLINE -> group-chained single-pass path (no stacking).
    n, b, h = 40, 16, 128
    embeds = make_embeds(3, n, b, h, jnp.float32)
    out = jax.block_until_ready(IReductionPallas(n, h)(embeds))
    ref = jnp.sum(jnp.stack(embeds, axis=0), axis=0)
    assert out.shape == (b, h)
    assert jnp.allclose(out, ref, atol=1e-4, rtol=1e-4)

    # Case 4: h_emb not a multiple of 128 -> lane-pad in wrapper, slice result.
    n, b, h = 3, 16, 96
    embeds = make_embeds(4, n, b, h, jnp.float32)
    out = jax.block_until_ready(IReductionPallas(n, h)(embeds))
    ref = jnp.sum(jnp.stack(embeds, axis=0), axis=0)
    assert out.shape == (b, h)
    assert jnp.allclose(out, ref, atol=1e-5, rtol=1e-5)

    print("KERNEL_OK")
</pallas_src>

<mosaic_0001>
module attributes {stable_mosaic.version = 11 : i64} {
  func.func @kernel(%arg0: i32, %arg1: i32, %arg2: memref<8x128xf32, #tpu.memory_space<vmem>>, %arg3: memref<8x128xf32, #tpu.memory_space<vmem>>, %arg4: memref<8x128xf32, #tpu.memory_space<vmem>>, %arg5: memref<8x128xf32, #tpu.memory_space<vmem>>, %arg6: memref<8x128xf32, #tpu.memory_space<vmem>>) attributes {dimension_semantics = [#tpu.dimension_semantics<parallel>, #tpu.dimension_semantics<parallel>], iteration_bounds = array<i64: 1, 1>, scalar_prefetch = 0 : i64, scratch_operands = 0 : i64, tpu.core_type = #tpu.core_type<tc>, window_params = [{transform_indices = @transform_0, window_bounds = array<i64: 8, 128>}, {transform_indices = @transform_1, window_bounds = array<i64: 8, 128>}, {transform_indices = @transform_2, window_bounds = array<i64: 8, 128>}, {transform_indices = @transform_3, window_bounds = array<i64: 8, 128>}, {transform_indices = @transform_4, window_bounds = array<i64: 8, 128>}]} {
    %c0 = arith.constant 0 : index
    %c0_0 = arith.constant 0 : index
    %0 = vector.load %arg2[%c0, %c0_0] : memref<8x128xf32, #tpu.memory_space<vmem>>, vector<8x128xf32>
    %c0_1 = arith.constant 0 : index
    %c0_2 = arith.constant 0 : index
    %1 = vector.load %arg3[%c0_1, %c0_2] : memref<8x128xf32, #tpu.memory_space<vmem>>, vector<8x128xf32>
    %2 = arith.addf %0, %1 : vector<8x128xf32>
    %c0_3 = arith.constant 0 : index
    %c0_4 = arith.constant 0 : index
    %3 = vector.load %arg4[%c0_3, %c0_4] : memref<8x128xf32, #tpu.memory_space<vmem>>, vector<8x128xf32>
    %4 = arith.addf %2, %3 : vector<8x128xf32>
    %c0_5 = arith.constant 0 : index
    %c0_6 = arith.constant 0 : index
    %5 = vector.load %arg5[%c0_5, %c0_6] : memref<8x128xf32, #tpu.memory_space<vmem>>, vector<8x128xf32>
    %6 = arith.addf %4, %5 : vector<8x128xf32>
    %c0_7 = arith.constant 0 : index
    %c0_8 = arith.constant 0 : index
    %7 = vector.load %arg6[%c0_7, %c0_8] : memref<8x128xf32, #tpu.memory_space<vmem>>, vector<8x128xf32>
    tpu.vector_store %arg6[%c0_7, %c0_8], %6 {strides = array<i32>} : memref<8x128xf32, #tpu.memory_space<vmem>>, vector<8x128xf32>,
    return
  }
  func.func @transform_0(%arg0: i32, %arg1: i32) -> (i32, i32) {
    %c0_i32 = arith.constant 0 : i32
    return %arg0, %arg1 : i32, i32
  }
  func.func @transform_1(%arg0: i32, %arg1: i32) -> (i32, i32) {
    %c0_i32 = arith.constant 0 : i32
    return %arg0, %arg1 : i32, i32
  }
  func.func @transform_2(%arg0: i32, %arg1: i32) -> (i32, i32) {
    %c0_i32 = arith.constant 0 : i32
    return %arg0, %arg1 : i32, i32
  }
  func.func @transform_3(%arg0: i32, %arg1: i32) -> (i32, i32) {
    %c0_i32 = arith.constant 0 : i32
    return %arg0, %arg1 : i32, i32
  }
  func.func @transform_4(%arg0: i32, %arg1: i32) -> (i32, i32) {
    %c0_i32 = arith.constant 0 : i32
    return %arg0, %arg1 : i32, i32
  }
}

</mosaic_0001>

<llo_original>
// kernel: tpu_custom_call.1
$region0: #{tpu_custom_call.1}
  #allocation0 [shape = 'u32[]', space=smem, size = 0x4, offset = 0x4, fixed_abs, tag = 'smem constant byte address 0x4 - core index']
  #allocation1 [shape = 'u32[72,128]{1,0:T(1,128)}', space=vmem, size = 0x9000, scoped, tag = 'internal scratch']
  %s0 = inlined_call_operand.hbm [shape: f32[8,128], index: 0, kind: input, shape index: {}]
  %s1 = inlined_call_operand.hbm [shape: f32[8,128], index: 1, kind: input, shape index: {}]
  %s2 = inlined_call_operand.hbm [shape: f32[8,128], index: 2, kind: input, shape index: {}]
  %s3 = inlined_call_operand.hbm [shape: f32[8,128], index: 3, kind: input, shape index: {}]
  %s4 = inlined_call_operand.hbm [shape: f32[8,128], index: 4, kind: output, shape index: {}]
  %s5 = sld [smem:[#allocation0]]
  $region42: #{tpu_custom_call.1} parent=0
    _
  %s7 = ssub.s32 1, %s5
  %s8 = scalar_select 0, %s7, %s5
  $region1: #{tpu_custom_call.1} parent=0
    #allocation2 [shape = 'u8[4096]{0}', space=vmem, size = 0x1000, scoped, tag = 'input window, operand 0, single buffered']
    #allocation3 [shape = 's32[1]{0}', space=sflag, size = 0x4, scoped, tag = 'scoped memory for tpu_custom_call.1']
    #allocation4 [shape = 's32[1]{0}', space=sflag, size = 0x4, scoped, tag = 'scoped memory for tpu_custom_call.1']
    #allocation5 [shape = 'u8[4096]{0}', space=vmem, size = 0x1000, scoped, tag = 'input window, operand 1, single buffered']
    #allocation6 [shape = 's32[1]{0}', space=sflag, size = 0x4, scoped, tag = 'scoped memory for tpu_custom_call.1']
    #allocation7 [shape = 'u8[4096]{0}', space=vmem, size = 0x1000, scoped, tag = 'input window, operand 2, single buffered']
    #allocation8 [shape = 'u8[4096]{0}', space=vmem, size = 0x1000, scoped, tag = 'input window, operand 3, single buffered']
    #allocation9 [shape = 's32[1]{0}', space=sflag, size = 0x4, scoped, tag = 'scoped memory for tpu_custom_call.1']
    #allocation10 [shape = 'u8[4096]{0}', space=vmem, size = 0x1000, scoped, tag = 'output window, operand 0, single buffered']
    %9 = vsyncpa [#allocation3], 0
    %10 = vsyncpa [#allocation6], 0
    %11 = vsyncpa [#allocation9], 0
    %12 = vsyncpa [#allocation4], 0
    // Predicated region
    $region2: #{tpu_custom_call.1} parent=1 // pred_check
      _
    $region3: #{tpu_custom_call.1} parent=1 // pred_check_branch
      %14 = sbr.rel (0) target = $region5
    $region4: #{tpu_custom_call.1} parent=1 // pred_region
      %16 = vsyncadd [#allocation3], 0
      %s18 = sshll.u32 %s0, 4
      %s19 = int_to_ptr.hbm [resolvable:$true] %s18
      %s20 = sshll.u32 [#allocation2], 4
      %s21 = int_to_ptr.vmem [resolvable:$true] %s20
      %23 = dma.hbm_to_vmem [thread:$0]  %s19, 128, %s21, [#allocation3]
    $region5: #{tpu_custom_call.1} parent=1 // pred_fallthru
      _
    // Predicated region
    $region6: #{tpu_custom_call.1} parent=1 // pred_check
      _
    $region7: #{tpu_custom_call.1} parent=1 // pred_check_branch
      %25 = sbr.rel (0) target = $region9
    $region8: #{tpu_custom_call.1} parent=1 // pred_region
      %27 = vsyncadd [#allocation6], 0
      %s29 = sshll.u32 %s1, 4
      %s30 = int_to_ptr.hbm [resolvable:$true] %s29
      %s31 = sshll.u32 [#allocation5], 4
      %s32 = int_to_ptr.vmem [resolvable:$true] %s31
      %34 = dma.hbm_to_vmem [thread:$0]  %s30, 128, %s32, [#allocation6]
    $region9: #{tpu_custom_call.1} parent=1 // pred_fallthru
      _
    // Predicated region
    $region10: #{tpu_custom_call.1} parent=1 // pred_check
      _
    $region11: #{tpu_custom_call.1} parent=1 // pred_check_branch
      %36 = sbr.rel (0) target = $region13
    $region12: #{tpu_custom_call.1} parent=1 // pred_region
      %38 = vsyncadd [#allocation6], 0
      %s40 = sshll.u32 %s2, 4
      %s41 = int_to_ptr.hbm [resolvable:$true] %s40
      %s42 = sshll.u32 [#allocation7], 4
      %s43 = int_to_ptr.vmem [resolvable:$true] %s42
      %45 = dma.hbm_to_vmem [thread:$0]  %s41, 128, %s43, [#allocation6]
    $region13: #{tpu_custom_call.1} parent=1 // pred_fallthru
      _
    // Predicated region
    $region14: #{tpu_custom_call.1} parent=1 // pred_check
      _
    $region15: #{tpu_custom_call.1} parent=1 // pred_check_branch
      %47 = sbr.rel (0) target = $region17
    $region16: #{tpu_custom_call.1} parent=1 // pred_region
      %49 = vsyncadd [#allocation9], 0
      %s51 = sshll.u32 %s3, 4
      %s52 = int_to_ptr.hbm [resolvable:$true] %s51
      %s53 = sshll.u32 [#allocation8], 4
      %s54 = int_to_ptr.vmem [resolvable:$true] %s53
      %56 = dma.hbm_to_vmem [thread:$0]  %s52, 128, %s54, [#allocation9]
    $region17: #{tpu_custom_call.1} parent=1 // pred_fallthru
      _
    // Predicated region
    $region18: #{tpu_custom_call.1} parent=1 // pred_check
      _
    $region19: #{tpu_custom_call.1} parent=1 // pred_check_branch
      %58 = sbr.rel (0) target = $region21
    $region20: #{tpu_custom_call.1} parent=1 // pred_region
      %60 = dma.done [#allocation3], 128
    $region21: #{tpu_custom_call.1} parent=1 // pred_fallthru
      _
    // Predicated region
    $region22: #{tpu_custom_call.1} parent=1 // pred_check
      _
    $region23: #{tpu_custom_call.1} parent=1 // pred_check_branch
      %62 = sbr.rel (0) target = $region25
    $region24: #{tpu_custom_call.1} parent=1 // pred_region
      %64 = dma.done [#allocation6], 128
    $region25: #{tpu_custom_call.1} parent=1 // pred_fallthru
      _
    // Predicated region
    $region26: #{tpu_custom_call.1} parent=1 // pred_check
      _
    $region27: #{tpu_custom_call.1} parent=1 // pred_check_branch
      %66 = sbr.rel (0) target = $region29
    $region28: #{tpu_custom_call.1} parent=1 // pred_region
      %68 = dma.done [#allocation6], 128
    $region29: #{tpu_custom_call.1} parent=1 // pred_fallthru
      _
    // Predicated region
    $region30: #{tpu_custom_call.1} parent=1 // pred_check
      _
    $region31: #{tpu_custom_call.1} parent=1 // pred_check_branch
      %70 = sbr.rel (0) target = $region33
    $region32: #{tpu_custom_call.1} parent=1 // pred_region
      %72 = dma.done [#allocation9], 128
    $region33: #{tpu_custom_call.1} parent=1 // pred_fallthru
      _
    %v73 = vld [vmem:[#allocation2] sm:$0xff]
    %v74 = vld [vmem:[#allocation5] sm:$0xff]
    %v75 = vadd.f32 %v73, %v74
    %v76 = vld [vmem:[#allocation7] sm:$0xff]
    %v77 = vadd.f32 %v75, %v76
    %v78 = vld [vmem:[#allocation8] sm:$0xff]
    %v79 = vadd.f32 %v77, %v78
    %80 = vst [vmem:[#allocation10] sm:$0xff] %v79
    // Predicated region
    $region34: #{tpu_custom_call.1} parent=1 // pred_check
      _
    $region35: #{tpu_custom_call.1} parent=1 // pred_check_branch
      %82 = sbr.rel (0) target = $region37
    $region36: #{tpu_custom_call.1} parent=1 // pred_region
      %84 = vsyncadd [#allocation4], 0
      %s86 = sshll.u32 [#allocation10], 4
      %s87 = int_to_ptr.vmem [resolvable:$true] %s86
      %s88 = sshll.u32 %s4, 4
      %s89 = int_to_ptr.hbm [resolvable:$true] %s88
      %91 = dma.vmem_to_hbm [thread:$0]  %s87, 128, %s89, [#allocation4]
    $region37: #{tpu_custom_call.1} parent=1 // pred_fallthru
      _
    // Predicated region
    $region38: #{tpu_custom_call.1} parent=1 // pred_check
      _
    $region39: #{tpu_custom_call.1} parent=1 // pred_check_branch
      %93 = sbr.rel (0) target = $region41
    $region40: #{tpu_custom_call.1} parent=1 // pred_region
      %95 = dma.done [#allocation4], 128
    $region41: #{tpu_custom_call.1} parent=1 // pred_fallthru
      _
    %96 = vsyncpa [#allocation3], 1
    %97 = vsyncpa [#allocation6], 1
    %98 = vsyncpa [#allocation9], 1
    %99 = vsyncpa [#allocation4], 1

</llo_original>
